<compile_context>
chip_gen: v7x
topology: tpu7x:2x2x1
jax: 0.10.0
libtpu: 0.0.40
codegen_flags: <defaults>
</compile_context>

<pallas_src>
import functools
import math

import jax
import jax.numpy as jnp
import numpy as np
from jax.experimental import pallas as pl
from jax.experimental.pallas import tpu as pltpu


def _round_up(x, m):
    return ((x + m - 1) // m) * m


# ----------------------------- kernels ------------------------------------


def _lgm_labeled_kernel(b_real, feat_ref, meansT_ref, yy_ref, labels_ref,
                        nsd_ref, part_ref):
    i = pl.program_id(0)
    feat = feat_ref[...]                                    # (TB, D), input dtype
    # Feed input dtype straight to the MXU; accumulate in f32.
    xy = jnp.dot(feat, meansT_ref[...],
                 preferred_element_type=jnp.float32)        # (TB, Cp)
    f = feat.astype(jnp.float32)
    xx = jnp.sum(f * f, axis=1, keepdims=True)              # (TB, 1)
    nsd = -0.5 * (xx - 2.0 * xy + yy_ref[...])              # (TB, Cp), f32
    nsd_ref[...] = nsd.astype(nsd_ref.dtype)

    tb, cp = nsd.shape
    labels = labels_ref[...]                                # (TB, 1) int32
    col = jax.lax.broadcasted_iota(jnp.int32, (tb, cp), 1)
    row = jax.lax.broadcasted_iota(jnp.int32, (tb, cp), 0) + i * tb
    # one-hot select nsd[i, l_i]; mask out batch-padding rows
    sel = jnp.where((col == labels) & (row < b_real), nsd, 0.0)
    part_ref[...] = jnp.full(part_ref.shape, jnp.sum(sel), dtype=part_ref.dtype)


def _lgm_unlabeled_kernel(b_real, c_real, feat_ref, meansT_ref, yy_ref,
                          nsd_ref, part_ref):
    i = pl.program_id(0)
    feat = feat_ref[...]
    xy = jnp.dot(feat, meansT_ref[...],
                 preferred_element_type=jnp.float32)
    f = feat.astype(jnp.float32)
    xx = jnp.sum(f * f, axis=1, keepdims=True)
    nsd = -0.5 * (xx - 2.0 * xy + yy_ref[...])
    nsd_ref[...] = nsd.astype(nsd_ref.dtype)

    tb, cp = nsd.shape
    col = jax.lax.broadcasted_iota(jnp.int32, (tb, cp), 1)
    masked = jnp.where(col < c_real, nsd, -jnp.inf)         # exclude padded classes
    rowmax = jnp.max(masked, axis=1, keepdims=True)         # (TB, 1) = nsd[i, argmax]
    row = jax.lax.broadcasted_iota(jnp.int32, (tb, 1), 0) + i * tb
    sel = jnp.where(row < b_real, rowmax, 0.0)              # mask batch-padding rows
    part_ref[...] = jnp.full(part_ref.shape, jnp.sum(sel), dtype=part_ref.dtype)


# ----------------------------- wrapper -------------------------------------


class LGMLossPallas:
    """JAX/Pallas re-implementation of the PyTorch LGMLoss forward pass."""

    def __init__(self, num_classes, feat_dim, alpha=0.1, lambda_=0.01, *, key):
        self.num_classes = num_classes
        self.feat_dim = feat_dim
        self.alpha = alpha
        self.lambda_ = lambda_
        # xavier_uniform_ with gain=sqrt(2): bound = gain * sqrt(6 / (fan_in + fan_out))
        gain = math.sqrt(2.0)
        bound = gain * math.sqrt(6.0 / (feat_dim + num_classes))
        self.means = jax.random.uniform(
            key, (num_classes, feat_dim), dtype=jnp.float32,
            minval=-bound, maxval=bound)

    def __call__(self, feat, labels=None):
        B, D = feat.shape
        C = self.num_classes
        Cp = _round_up(C, 128)                 # lane-dense class axis

        # Hoisted out of the kernel (once per call, O(C*D)):
        #   means^T padded to (D, Cp) and yy = sum(means^2) padded to (1, Cp).
        meansT = jnp.zeros((D, Cp), dtype=self.means.dtype)
        meansT = meansT.at[:, :C].set(self.means.T)
        yy = jnp.zeros((1, Cp), dtype=jnp.float32)
        yy = yy.at[:, :C].set(
            jnp.sum(self.means.astype(jnp.float32) ** 2, axis=1)[None, :])

        # Batch tile: big enough to pipeline well, small enough that the
        # double-buffered working set stays well under v7x's 64 MiB VMEM.
        TB = 512
        while TB > 8 and 8 * (TB * (D + Cp) + D * Cp) > (16 << 20):
            TB //= 2
        TB = min(TB, _round_up(B, 8))
        Bp = _round_up(B, TB)
        G = Bp // TB

        feat_p = jnp.pad(feat, ((0, Bp - B), (0, 0)))

        out_shape = (
            jax.ShapeDtypeStruct((Bp, Cp), jnp.float32),      # neg_sqr_dist (padded)
            jax.ShapeDtypeStruct((G * 8, 128), jnp.float32),  # per-tile partial sums
        )
        out_specs = (
            pl.BlockSpec((TB, Cp), lambda i: (i, 0)),
            pl.BlockSpec((8, 128), lambda i: (i, 0)),
        )
        cost = pl.CostEstimate(
            flops=2 * Bp * Cp * D,
            transcendentals=0,
            bytes_accessed=4 * (Bp * D + D * Cp + Bp * Cp))
        cparams = pltpu.CompilerParams(
            dimension_semantics=("parallel",),        # megacore-shardable on v7x
            vmem_limit_bytes=32 * 1024 * 1024)

        feat_spec = pl.BlockSpec((TB, D), lambda i: (i, 0))
        means_spec = pl.BlockSpec((D, Cp), lambda i: (0, 0))
        yy_spec = pl.BlockSpec((1, Cp), lambda i: (0, 0))

        if labels is None:
            kernel = functools.partial(_lgm_unlabeled_kernel, B, C)
            in_specs = [feat_spec, means_spec, yy_spec]
            args = (feat_p, meansT, yy)
        else:
            labels_p = jnp.pad(labels.astype(jnp.int32), (0, Bp - B)).reshape(Bp, 1)
            kernel = functools.partial(_lgm_labeled_kernel, B)
            label_spec = pl.BlockSpec((TB, 1), lambda i: (i, 0))
            in_specs = [feat_spec, means_spec, yy_spec, label_spec]
            args = (feat_p, meansT, yy, labels_p)

        nsd_p, partials = pl.pallas_call(
            kernel,
            grid=(G,),
            out_shape=out_shape,
            in_specs=in_specs,
            out_specs=out_specs,
            compiler_params=cparams,
            cost_estimate=cost,
        )(*args)

        nsd = nsd_p[:B, :C]
        selected = jnp.sum(partials.reshape(G, 8, 128)[:, 0, 0])
        loss = self.lambda_ * (-selected) / jnp.float32(B)
        # TODO(synk): the PyTorch forward also builds `logits_with_margin` but never
        # returns it (dead code), so it is intentionally omitted here.
        return nsd, loss, self.means


# ----------------------------- reference (pure JAX) ------------------------


def _reference(feat, means, lambda_, labels=None):
    xy = feat @ means.T
    xx = jnp.sum(feat ** 2, axis=1, keepdims=True)
    yy = jnp.sum(means.T ** 2, axis=0, keepdims=True)
    nsd = -0.5 * (xx - 2.0 * xy + yy)
    B = feat.shape[0]
    if labels is None:
        labels = jnp.argmax(nsd, axis=1)
    means_batch = means[labels]
    loss = lambda_ * (jnp.sum((feat - means_batch) ** 2) / 2.0) / B
    return nsd, loss


# ----------------------------- main -----------------------------------------


if __name__ == "__main__":
    key = jax.random.PRNGKey(0)
    k_means, k_feat, k_lab = jax.random.split(key, 3)

    B, D, C = 8, 32, 16   # batch, feat_dim, num_classes (small test shapes)

    module = LGMLossPallas(num_classes=C, feat_dim=D, alpha=0.1, lambda_=0.01,
                           key=k_means)
    feat = jax.random.normal(k_feat, (B, D), dtype=jnp.float32)
    labels = jax.random.randint(k_lab, (B,), 0, C, dtype=jnp.int32)

    # labeled branch
    nsd1, loss1, means1 = module(feat, labels)
    jax.block_until_ready((nsd1, loss1, means1))
    ref_nsd1, ref_loss1 = _reference(feat, module.means, module.lambda_, labels)
    np.testing.assert_allclose(np.asarray(nsd1), np.asarray(ref_nsd1),
                               rtol=1e-5, atol=1e-5)
    np.testing.assert_allclose(np.asarray(loss1), np.asarray(ref_loss1),
                               rtol=1e-5, atol=1e-6)

    # unlabeled (pseudo-label) branch
    nsd2, loss2, means2 = module(feat, None)
    jax.block_until_ready((nsd2, loss2, means2))
    ref_nsd2, ref_loss2 = _reference(feat, module.means, module.lambda_, None)
    np.testing.assert_allclose(np.asarray(nsd2), np.asarray(ref_nsd2),
                               rtol=1e-5, atol=1e-5)
    np.testing.assert_allclose(np.asarray(loss2), np.asarray(ref_loss2),
                               rtol=1e-5, atol=1e-6)

    print("KERNEL_OK")
</pallas_src>

<mosaic_0001>
module attributes {stable_mosaic.version = 11 : i64} {
  func.func @_lgm_labeled_kernel(%arg0: i32, %arg1: memref<8x32xf32, #tpu.memory_space<vmem>>, %arg2: memref<32x128xf32, #tpu.memory_space<vmem>>, %arg3: memref<1x128xf32, #tpu.memory_space<vmem>>, %arg4: memref<8x1xi32, #tpu.memory_space<vmem>>, %arg5: memref<8x128xf32, #tpu.memory_space<vmem>>, %arg6: memref<8x128xf32, #tpu.memory_space<vmem>>) attributes {dimension_semantics = [#tpu.dimension_semantics<parallel>], iteration_bounds = array<i64: 1>, scalar_prefetch = 0 : i64, scratch_operands = 0 : i64, tpu.core_type = #tpu.core_type<tc>, window_params = [{transform_indices = @transform_0, window_bounds = array<i64: 8, 32>}, {pipeline_mode = #tpu.pipeline_mode<synchronous>, transform_indices = @transform_1, window_bounds = array<i64: 32, 128>}, {pipeline_mode = #tpu.pipeline_mode<synchronous>, transform_indices = @transform_2, window_bounds = array<i64: 1, 128>}, {transform_indices = @transform_3, window_bounds = array<i64: 8, 1>}, {transform_indices = @transform_4, window_bounds = array<i64: 8, 128>}, {transform_indices = @transform_5, window_bounds = array<i64: 8, 128>}]} {
    %c0 = arith.constant 0 : index
    %c0_0 = arith.constant 0 : index
    %0 = vector.load %arg1[%c0, %c0_0] : memref<8x32xf32, #tpu.memory_space<vmem>>, vector<8x32xf32>
    %c0_1 = arith.constant 0 : index
    %c0_2 = arith.constant 0 : index
    %1 = vector.load %arg2[%c0_1, %c0_2] : memref<32x128xf32, #tpu.memory_space<vmem>>, vector<32x128xf32>
    %cst = arith.constant dense<0.000000e+00> : vector<8x128xf32>
    %2 = tpu.matmul %0, %1, %cst {dimension_numbers = #tpu.dot_dimension_numbers<[1], [0], [0], [1], [0, 0, 1, 1], [], []>} : vector<8x32xf32>, vector<32x128xf32>, vector<8x128xf32> -> vector<8x128xf32>
    %3 = arith.mulf %0, %0 : vector<8x32xf32>
    %cst_3 = arith.constant dense<0.000000e+00> : vector<8xf32>
    %4 = vector.multi_reduction <add>, %3, %cst_3 [1] : vector<8x32xf32> to vector<8xf32>
    %5 = vector.shape_cast %4 : vector<8xf32> to vector<8x1xf32>
    %cst_4 = arith.constant 2.000000e+00 : f32
    %6 = vector.broadcast %cst_4 : f32 to vector<8x128xf32>
    %7 = arith.mulf %6, %2 : vector<8x128xf32>
    %8 = vector.broadcast %5 : vector<8x1xf32> to vector<8x128xf32>
    %9 = arith.subf %8, %7 : vector<8x128xf32>
    %c0_5 = arith.constant 0 : index
    %c0_6 = arith.constant 0 : index
    %10 = vector.load %arg3[%c0_5, %c0_6] : memref<1x128xf32, #tpu.memory_space<vmem>>, vector<1x128xf32>
    %11 = vector.broadcast %10 : vector<1x128xf32> to vector<8x128xf32>
    %12 = arith.addf %9, %11 : vector<8x128xf32>
    %cst_7 = arith.constant -5.000000e-01 : f32
    %13 = vector.broadcast %cst_7 : f32 to vector<8x128xf32>
    %14 = arith.mulf %13, %12 : vector<8x128xf32>
    %c0_8 = arith.constant 0 : index
    %c0_9 = arith.constant 0 : index
    %15 = vector.load %arg5[%c0_8, %c0_9] : memref<8x128xf32, #tpu.memory_space<vmem>>, vector<8x128xf32>
    tpu.vector_store %arg5[%c0_8, %c0_9], %14 {strides = array<i32>} : memref<8x128xf32, #tpu.memory_space<vmem>>, vector<8x128xf32>,
    %c0_10 = arith.constant 0 : index
    %c0_11 = arith.constant 0 : index
    %16 = vector.load %arg4[%c0_10, %c0_11] : memref<8x1xi32, #tpu.memory_space<vmem>>, vector<8x1xi32>
    %17 = tpu.iota {dimensions = array<i32: 1>} : vector<8x128xi32>
    %18 = tpu.iota {dimensions = array<i32: 0>} : vector<8x128xi32>
    %c8_i32 = arith.constant 8 : i32
    %19 = arith.muli %arg0, %c8_i32 : i32
    %20 = vector.broadcast %19 : i32 to vector<8x128xi32>
    %21 = arith.addi %18, %20 : vector<8x128xi32>
    %22 = vector.broadcast %16 : vector<8x1xi32> to vector<8x128xi32>
    %23 = arith.cmpi eq, %17, %22 : vector<8x128xi32>
    %c8_i32_12 = arith.constant 8 : i32
    %24 = vector.broadcast %c8_i32_12 : i32 to vector<8x128xi32>
    %25 = arith.cmpi slt, %21, %24 : vector<8x128xi32>
    %26 = arith.andi %23, %25 : vector<8x128xi1>
    %cst_13 = arith.constant 0.000000e+00 : f32
    %27 = vector.broadcast %cst_13 : f32 to vector<8x128xf32>
    %28 = arith.select %26, %14, %27 : vector<8x128xi1>, vector<8x128xf32>
    %29 = vector.shape_cast %28 : vector<8x128xf32> to vector<1x8x128xf32>
    %cst_14 = arith.constant dense<0.000000e+00> : vector<1xf32>
    %30 = vector.multi_reduction <add>, %29, %cst_14 [1, 2] : vector<1x8x128xf32> to vector<1xf32>
    %31 = vector.shape_cast %30 : vector<1xf32> to vector<1x1x1xf32>
    %32 = vector.extract %31[0, 0, 0] : f32 from vector<1x1x1xf32>
    %33 = vector.broadcast %32 : f32 to vector<8x128xf32>
    %c0_15 = arith.constant 0 : index
    %c0_16 = arith.constant 0 : index
    %34 = vector.load %arg6[%c0_15, %c0_16] : memref<8x128xf32, #tpu.memory_space<vmem>>, vector<8x128xf32>
    tpu.vector_store %arg6[%c0_15, %c0_16], %33 {strides = array<i32>} : memref<8x128xf32, #tpu.memory_space<vmem>>, vector<8x128xf32>,
    return
  }
  func.func @transform_0(%arg0: i32) -> (i32, i32) {
    %c0_i32 = arith.constant 0 : i32
    %c0_i32_0 = arith.constant 0 : i32
    return %arg0, %c0_i32 : i32, i32
  }
  func.func @transform_1(%arg0: i32) -> (i32, i32) {
    %c0_i32 = arith.constant 0 : i32
    %c0_i32_0 = arith.constant 0 : i32
    %c0_i32_1 = arith.constant 0 : i32
    return %c0_i32, %c0_i32_0 : i32, i32
  }
  func.func @transform_2(%arg0: i32) -> (i32, i32) {
    %c0_i32 = arith.constant 0 : i32
    %c0_i32_0 = arith.constant 0 : i32
    %c0_i32_1 = arith.constant 0 : i32
    return %c0_i32, %c0_i32_0 : i32, i32
  }
  func.func @transform_3(%arg0: i32) -> (i32, i32) {
    %c0_i32 = arith.constant 0 : i32
    %c0_i32_0 = arith.constant 0 : i32
    return %arg0, %c0_i32 : i32, i32
  }
  func.func @transform_4(%arg0: i32) -> (i32, i32) {
    %c0_i32 = arith.constant 0 : i32
    %c0_i32_0 = arith.constant 0 : i32
    return %arg0, %c0_i32 : i32, i32
  }
  func.func @transform_5(%arg0: i32) -> (i32, i32) {
    %c0_i32 = arith.constant 0 : i32
    %c0_i32_0 = arith.constant 0 : i32
    return %arg0, %c0_i32 : i32, i32
  }
}

</mosaic_0001>

<llo_original>
// kernel: tpu_custom_call.1
$region0: #{tpu_custom_call.1}
  #allocation0 [shape = 'u32[]', space=smem, size = 0x4, offset = 0x4, fixed_abs, tag = 'smem constant byte address 0x4 - core index']
  #allocation1 [shape = 'u32[144,128]{1,0:T(1,128)}', space=vmem, size = 0x12000, scoped, tag = 'internal scratch']
  %s0 = inlined_call_operand.vmem [shape: f32[8,32], index: 0, kind: input, shape index: {}]
  %s1 = inlined_call_operand.hbm [shape: f32[32,128], index: 1, kind: input, shape index: {}]
  %s2 = inlined_call_operand.vmem [shape: f32[1,128], index: 2, kind: input, shape index: {}]
  %s3 = inlined_call_operand.vmem [shape: s32[8,1], index: 3, kind: input, shape index: {}]
  %s4 = inlined_call_operand.hbm [shape: f32[8,128], index: 4, kind: output, shape index: {0}]
  %s5 = inlined_call_operand.hbm [shape: f32[8,128], index: 5, kind: output, shape index: {1}]
  %6 = xla_tuple %s4, %s5
  %s7 = sld [smem:[#allocation0]]
  $region38: #{tpu_custom_call.1} parent=0
    _
  %s9 = ssub.s32 1, %s7
  %s10 = scalar_select 0, %s9, %s7
  $region1: #{tpu_custom_call.1} parent=0
    #allocation2 [shape = 'u8[16384]{0}', space=vmem, size = 0x4000, scoped, tag = 'input window, operand 1, single buffered']
    #allocation3 [shape = 's32[1]{0}', space=sflag, size = 0x4, scoped, tag = 'scoped memory for tpu_custom_call.1']
    #allocation4 [shape = 's32[1]{0}', space=sflag, size = 0x4, scoped, tag = 'scoped memory for tpu_custom_call.1']
    #allocation5 [shape = 'u8[4096]{0}', space=vmem, size = 0x1000, scoped, tag = 'output window, operand 0, single buffered']
    #allocation6 [shape = 'u8[4096]{0}', space=vmem, size = 0x1000, scoped, tag = 'output window, operand 1, single buffered']
    #allocation7 [shape = 's32[1]{0}', space=sflag, size = 0x4, scoped, tag = 'scoped memory for tpu_custom_call.1']
    %11 = vsyncpa [#allocation3], 0
    %12 = vsyncpa [#allocation4], 0
    %13 = vsyncpa [#allocation7], 0
    // Predicated region
    $region2: #{tpu_custom_call.1} parent=1 // pred_check
      _
    $region3: #{tpu_custom_call.1} parent=1 // pred_check_branch
      %15 = sbr.rel (0) target = $region5
    $region4: #{tpu_custom_call.1} parent=1 // pred_region
      _
    $region5: #{tpu_custom_call.1} parent=1 // pred_fallthru
      _
    // Predicated region
    $region6: #{tpu_custom_call.1} parent=1 // pred_check
      _
    $region7: #{tpu_custom_call.1} parent=1 // pred_check_branch
      %17 = sbr.rel (0) target = $region9
    $region8: #{tpu_custom_call.1} parent=1 // pred_region
      %s19 = ssub.s32 512, 512
      %20 = vsyncadd [#allocation3], %s19
      %s21 = sshll.u32 [#allocation2], 4
      %s22 = int_to_ptr.vmem [resolvable:$true] %s21
      %27 = dma.hbm_to_vmem [thread:$0]  %s1, 512, %s22, [#allocation3], 128, 128, 8
    $region9: #{tpu_custom_call.1} parent=1 // pred_fallthru
      _
    // Predicated region
    $region10: #{tpu_custom_call.1} parent=1 // pred_check
      _
    $region11: #{tpu_custom_call.1} parent=1 // pred_check_branch
      %29 = sbr.rel (0) target = $region13
    $region12: #{tpu_custom_call.1} parent=1 // pred_region
      _
    $region13: #{tpu_custom_call.1} parent=1 // pred_fallthru
      _
    // Predicated region
    $region14: #{tpu_custom_call.1} parent=1 // pred_check
      _
    $region15: #{tpu_custom_call.1} parent=1 // pred_check_branch
      %31 = sbr.rel (0) target = $region17
    $region16: #{tpu_custom_call.1} parent=1 // pred_region
      _
    $region17: #{tpu_custom_call.1} parent=1 // pred_fallthru
      _
    // Predicated region
    $region18: #{tpu_custom_call.1} parent=1 // pred_check
      _
    $region19: #{tpu_custom_call.1} parent=1 // pred_check_branch
      %33 = sbr.rel (0) target = $region21
    $region20: #{tpu_custom_call.1} parent=1 // pred_region
      %34 = dma.done [#allocation3], 512
    $region21: #{tpu_custom_call.1} parent=1 // pred_fallthru
      _
    %v35 = vld [vmem:[%s0] sm:$0xff]
    %v36 = vld [vmem:[#allocation2] sm:$0xff]
    %v37 = vld [vmem:[#allocation2 + $0x8] sm:$0xff]
    %v38 = vld [vmem:[#allocation2 + $0x10] sm:$0xff]
    %v39 = vld [vmem:[#allocation2 + $0x18] sm:$0xff]
    %vm40 = vcmask 261120
    %v42 = vsel %vm40, %v35, 0
    %44 = vmatprep.subr.mxu0 0.0
    %45 = vmatpush1.msra.mxu0 %v36
    %46 = vmatprep.subr.mxu0 0.0
    %47 = vmatpush1.msra.mxu0 %v37
    %48 = vmatprep.subr.mxu0 0.0
    %49 = vmatpush1.msra.mxu0 %v38
    %50 = vmatprep.subr.mxu0 0.0
    %51 = vmatpush1.msra.mxu0 %v39
    %52 = vmatprep.subr.mxu0 0.0
    %53 = vmatpush1.msra.mxu0 0.0
    %54 = vmatprep.subr.mxu0 0.0
    %55 = vmatpush1.msra.mxu0 0.0
    %56 = vmatprep.subr.mxu0 0.0
    %57 = vmatpush1.msra.mxu0 0.0
    %58 = vmatprep.subr.mxu0 0.0
    %59 = vmatpush1.msra.mxu0 0.0
    %60 = vmatprep.subr.mxu0 0.0
    %61 = vmatpush1.msra.mxu0 0.0
    %62 = vmatprep.subr.mxu0 0.0
    %63 = vmatpush1.msra.mxu0 0.0
    %64 = vmatprep.subr.mxu0 0.0
    %65 = vmatpush1.msra.mxu0 0.0
    %66 = vmatprep.subr.mxu0 0.0
    %67 = vmatpush1.msra.mxu0 0.0
    %68 = vmatprep.subr.mxu0 0.0
    %69 = vmatpush1.msra.mxu0 0.0
    %70 = vmatprep.subr.mxu0 0.0
    %71 = vmatpush1.msra.mxu0 0.0
    %72 = vmatprep.subr.mxu0 0.0
    %73 = vmatpush1.msra.mxu0 0.0
    %74 = vmatprep.subr.mxu0 0.0
    %75 = vmatpush1.msra.mxu0 0.0
    %76 = vmatprep.subr.mxu0 0.0
    %77 = vmatpush1.msra.mxu0 0.0
    %78 = vmatprep.subr.mxu0 0.0
    %79 = vmatpush1.msra.mxu0 0.0
    %80 = vmatprep.subr.mxu0 0.0
    %81 = vmatpush1.msra.mxu0 0.0
    %82 = vmatprep.subr.mxu0 0.0
    %83 = vmatpush1.msra.mxu0 0.0
    %84 = vmatprep.subr.mxu0 0.0
    %85 = vmatpush1.msra.mxu0 0.0
    %86 = vmatprep.subr.mxu0 0.0
    %87 = vmatpush1.msra.mxu0 0.0
    %88 = vmatprep.subr.mxu0 0.0
    %89 = vmatpush1.msra.mxu0 0.0
    %90 = vmatprep.subr.mxu0 0.0
    %91 = vmatpush1.msra.mxu0 0.0
    %92 = vmatprep.subr.mxu0 0.0
    %93 = vmatpush1.msra.mxu0 0.0
    %94 = vmatprep.subr.mxu0 0.0
    %95 = vmatpush1.msra.mxu0 0.0
    %96 = vmatprep.subr.mxu0 0.0
    %97 = vmatpush1.msra.mxu0 0.0
    %98 = vmatprep.subr.mxu0 0.0
    %99 = vmatpush1.msra.mxu0 0.0
    %100 = vmatprep.subr.mxu0 0.0
    %101 = vmatpush1.msra.mxu0 0.0
    %102 = vmatprep.subr.mxu0 0.0
    %103 = vmatpush1.msra.mxu0 0.0
    %104 = vmatprep.subr.mxu0 0.0
    %105 = vmatpush1.msra.mxu0 0.0
    %106 = vmatprep.subr.mxu0 0.0
    %107 = vmatpush1.msra.mxu0 0.0
    %108 = vmatprep.mubr.f32.mxu0 0.0
    %109 = vmatmul.mubr.f32.gmra.mrb[0].mxu0 %v42
    %v110 = vpop.f32.mrb[0].mxu0
    %v111 = vadd.f32 0.0, %v110
    %v112 = vpop.f32.mrb[0].mxu0
    %113 = vdwg.mxu0
    %v114 = vmul.f32 %v35, %v35
    %v115 = vsel %vm40, %v114, 0.0
    %116 = vadd.xlane.f32.xlu0 %v115
    %v117 = vpop.xlane.xlu0 %116
    %v118 = vmul.f32 %v111, 2.0
    %v119 = vsub.f32 %v117, %v118
    %v120 = vld [vmem:[%s2] sm:$0x1]
    %v122 = vlaneseq
    %v123 = vshrl.u32 %v122, 7
    %v124 = vsub.s32 0, %v123
    %v125 = vrot.slane %v120, %v124
    %v127 = vadd.f32 %v119, %v125
    %v128 = vmul.f32 %v127, -0.5
    %129 = vst [vmem:[#allocation5] sm:$0xff] %v128
    %v130 = vld [vmem:[%s3] sm:$0xff]
    %v131 = vlaneseq
    %v132 = vand.u32 %v131, 127
    %v133 = vlaneseq
    %v134 = vshrl.u32 %v133, 7
    %s135 = smul.u32 0, 8
    %v136 = vstv %s135
    %v137 = vadd.s32 %v134, %v136
    %138 = vset.pattern.permute.xlu0 0
    %139 = vperm.xlu0 %138, %v130
    %v140 = vpop.permute.xlu0 %139
    %vm141 = vcmp.eq.s32.totalorder %v132, %v140
    %vm142 = vcmp.lt.s32.totalorder %v137, 8
    %vm143 = vmand %vm141, %vm142
    %v144 = vsel %vm143, %v128, 0.0
    %145 = vadd.xlane.f32.xlu0 %v144
    %v146 = vpop.xlane.xlu0 %145
    %v147 = vrot.slane %v146, 4
    %v148 = vadd.f32 %v146, %v147
    %v149 = vrot.slane %v148, 2
    %v150 = vadd.f32 %v148, %v149
    %v151 = vrot.slane %v150, 1
    %v152 = vadd.f32 %v150, %v151
    %s153 = vtos %v152
    %v154 = vstv %s153
    %155 = vst [vmem:[#allocation6] sm:$0xff] %v154
    // Predicated region
    $region22: #{tpu_custom_call.1} parent=1 // pred_check
      _
    $region23: #{tpu_custom_call.1} parent=1 // pred_check_branch
      %157 = sbr.rel (0) target = $region25
    $region24: #{tpu_custom_call.1} parent=1 // pred_region
      %s159 = ssub.s32 128, 128
      %160 = vsyncadd [#allocation4], %s159
      %s162 = sshll.u32 [#allocation5], 4
      %s163 = int_to_ptr.vmem [resolvable:$true] %s162
      %165 = dma.vmem_to_hbm [thread:$0]  %s163, 128, %s4, [#allocation4]
    $region25: #{tpu_custom_call.1} parent=1 // pred_fallthru
      _
    // Predicated region
    $region26: #{tpu_custom_call.1} parent=1 // pred_check
      _
    $region27: #{tpu_custom_call.1} parent=1 // pred_check_branch
      %167 = sbr.rel (0) target = $region29
    $region28: #{tpu_custom_call.1} parent=1 // pred_region
      %s169 = ssub.s32 128, 128
      %170 = vsyncadd [#allocation7], %s169
      %s172 = sshll.u32 [#allocation6], 4
      %s173 = int_to_ptr.vmem [resolvable:$true] %s172
      %175 = dma.vmem_to_hbm [thread:$0]  %s173, 128, %s5, [#allocation7]
    $region29: #{tpu_custom_call.1} parent=1 // pred_fallthru
      _
    // Predicated region
    $region30: #{tpu_custom_call.1} parent=1 // pred_check
      _
    $region31: #{tpu_custom_call.1} parent=1 // pred_check_branch
      %177 = sbr.rel (0) target = $region33
    $region32: #{tpu_custom_call.1} parent=1 // pred_region
      %178 = dma.done [#allocation4], 128
    $region33: #{tpu_custom_call.1} parent=1 // pred_fallthru
      _
    // Predicated region
    $region34: #{tpu_custom_call.1} parent=1 // pred_check
      _
    $region35: #{tpu_custom_call.1} parent=1 // pred_check_branch
      %180 = sbr.rel (0) target = $region37
    $region36: #{tpu_custom_call.1} parent=1 // pred_region
      %181 = dma.done [#allocation7], 128
    $region37: #{tpu_custom_call.1} parent=1 // pred_fallthru
      _
    %182 = vsyncpa [#allocation3], 1
    %183 = vsyncpa [#allocation4], 1
    %184 = vsyncpa [#allocation7], 1

</llo_original>
